<compile_context>
chip_gen: v5e
topology: v5e:2x2
jax: 0.10.0
libtpu: 0.0.40
codegen_flags: <defaults>
</compile_context>

<pallas_src>
import functools

import jax
import jax.numpy as jnp
from jax.experimental import pallas as pl
from jax.experimental.pallas import tpu as pltpu

LANES = 128
SUBLANES = 16                            # lcm of f32 (8) / bf16 (16) sublane tiles
CHUNK = SUBLANES * LANES                 # 2048 elements
TARGET_BLOCK_BYTES = 4 * 1024 * 1024     # ~4 MiB input slab per grid step


def _tensorcores_per_device():
    """2 TensorCores per device on v7x (megacore 'parallel' split), else 1."""
    try:
        kind = jax.devices()[0].device_kind.lower()
    except Exception:
        return 1
    return 2 if ("7x" in kind or "v7" in kind) else 1


def _loss_kernel(p_ref, t_ref, osq_ref, orelu_ref, acc_sq, acc_relu, *,
                 block_rows, acc_rows, bpp, rows_valid, needs_mask):
    part = pl.program_id(0)     # TensorCore split ("parallel"; v7x only)
    j = pl.program_id(1)        # streaming / reduction axis ("arbitrary")

    @pl.when(j == 0)
    def _():
        acc_sq[...] = jnp.zeros_like(acc_sq)
        acc_relu[...] = jnp.zeros_like(acc_relu)

    n_chunks = block_rows // acc_rows
    # TODO(synk): block_start is int32; would overflow only for > ~2.7e11 elements.
    block_start = (part * bpp + j) * block_rows

    def accumulate(masked):
        def body(c, carry):
            r0 = pl.multiple_of(c * acc_rows, acc_rows)
            d = (p_ref[pl.ds(r0, acc_rows), :].astype(jnp.float32)
                 - t_ref[pl.ds(r0, acc_rows), :].astype(jnp.float32))
            dsq = d * d
            drelu = jnp.maximum(d, jnp.float32(0.0))
            if masked:
                # Mask rows past the valid row count (ragged last block and any
                # phantom blocks introduced by rounding the grid up).
                row_ids = (jax.lax.broadcasted_iota(jnp.int32, (acc_rows, LANES), 0)
                           + block_start + r0)
                valid = row_ids < rows_valid
                dsq = jnp.where(valid, dsq, 0.0)
                drelu = jnp.where(valid, drelu, 0.0)
            acc_sq[...] += dsq
            acc_relu[...] += drelu
            return carry

        if n_chunks == 1:
            body(0, 0)
        else:
            jax.lax.fori_loop(0, n_chunks, body, 0, unroll=min(4, n_chunks))

    if not needs_mask:
        accumulate(masked=False)
    else:
        is_interior = block_start + block_rows <= rows_valid

        @pl.when(is_interior)
        def _():
            accumulate(masked=False)       # hot path: no mask ops

        @pl.when(jnp.logical_not(is_interior))
        def _():
            accumulate(masked=True)        # ragged / phantom blocks only

    @pl.when(j == pl.num_programs(1) - 1)
    def _():
        osq_ref[0] = acc_sq[...]
        orelu_ref[0] = acc_relu[...]


def custom_loss(predictions, targets, alpha):
    """mean((p - t)**2) + alpha * mean(relu(p - t)) on TPU via Pallas."""
    assert predictions.shape == targets.shape
    n = predictions.size
    assert n > 0

    def _flatten(x):
        x = x.reshape(-1)
        if x.dtype == jnp.float32 or x.dtype == jnp.bfloat16:
            return x                       # native dtype pass-through
        return x.astype(jnp.float32)

    p = _flatten(predictions)
    t = _flatten(targets)

    # Ragged handling without a whole-array pad copy: aligned head -> kernel,
    # (< 2048-element) tail -> plain jnp, summed into the kernel partials.
    n_head = (n // CHUNK) * CHUNK
    tail_sq = tail_relu = None
    if n_head == 0:
        # Entire input smaller than one chunk: a tiny pad is cheapest
        # (padded positions give d == 0 and contribute nothing).
        pad = CHUNK - n
        p = jnp.pad(p, (0, pad))
        t = jnp.pad(t, (0, pad))
        n_head = CHUNK
    elif n_head != n:
        dtail = p[n_head:].astype(jnp.float32) - t[n_head:].astype(jnp.float32)
        tail_sq = jnp.sum(dtail * dtail)
        tail_relu = jnp.sum(jnp.maximum(dtail, 0.0))
        p = p[:n_head]
        t = t[:n_head]

    rows = n_head // LANES                 # multiple of SUBLANES (16)
    p2 = p.reshape(rows, LANES)
    t2 = t.reshape(rows, LANES)

    # ~4 MiB slab per input per step (8192 rows f32 / 16384 rows bf16);
    # 2 inputs x 2 pipeline buffers x 4 MiB = 16 MiB, inside the 32 MiB budget.
    elem_bytes = max(p2.dtype.itemsize, t2.dtype.itemsize)
    max_block_rows = TARGET_BLOCK_BYTES // (LANES * elem_bytes)
    block_rows = min(max_block_rows, rows)           # multiple of 16

    num_blocks = pl.cdiv(rows, block_rows)
    n_parts = 2 if (_tensorcores_per_device() >= 2 and num_blocks >= 2) else 1
    bpp = pl.cdiv(num_blocks, n_parts)               # blocks per part
    needs_mask = (n_parts * bpp * block_rows) != rows

    # Small accumulators: largest of {128,64,32,16} rows dividing block_rows.
    acc_rows = 16
    for cand in (128, 64, 32):
        if block_rows % cand == 0:
            acc_rows = cand
            break
    acc_rows = min(acc_rows, block_rows)

    if n_parts * bpp == num_blocks:
        def in_map(part, j):
            return (part * bpp + j, 0)
    else:
        # Phantom (rounded-up) block indices clamp onto the last real block;
        # their contribution is zeroed by the in-kernel row mask.
        def in_map(part, j):
            return (jnp.minimum(part * bpp + j, num_blocks - 1), 0)

    def out_map(part, j):
        return (part, 0, 0)

    kernel = functools.partial(
        _loss_kernel, block_rows=block_rows, acc_rows=acc_rows, bpp=bpp,
        rows_valid=rows, needs_mask=needs_mask)

    out_sq, out_relu = pl.pallas_call(
        kernel,
        out_shape=(
            jax.ShapeDtypeStruct((n_parts, acc_rows, LANES), jnp.float32),
            jax.ShapeDtypeStruct((n_parts, acc_rows, LANES), jnp.float32),
        ),
        grid_spec=pltpu.PrefetchScalarGridSpec(
            num_scalar_prefetch=0,
            grid=(n_parts, bpp),
            in_specs=[
                pl.BlockSpec((block_rows, LANES), in_map),
                pl.BlockSpec((block_rows, LANES), in_map),
            ],
            out_specs=(
                pl.BlockSpec((1, acc_rows, LANES), out_map),
                pl.BlockSpec((1, acc_rows, LANES), out_map),
            ),
            scratch_shapes=[
                pltpu.VMEM((acc_rows, LANES), jnp.float32),
                pltpu.VMEM((acc_rows, LANES), jnp.float32),
            ],
        ),
        compiler_params=pltpu.CompilerParams(
            dimension_semantics=("parallel", "arbitrary"),
            vmem_limit_bytes=32 * 1024 * 1024,   # fits v5e/v6e/v7x scoped VMEM
        ),
    )(p2, t2)

    sum_sq = jnp.sum(out_sq)
    sum_relu = jnp.sum(out_relu)
    if tail_sq is not None:
        sum_sq = sum_sq + tail_sq
        sum_relu = sum_relu + tail_relu

    # alpha stays outside the kernel so a traced alpha never forces recompiles.
    inv_n = jnp.float32(1.0 / n)
    return sum_sq * inv_n + alpha * (sum_relu * inv_n)


if __name__ == "__main__":
    key = jax.random.PRNGKey(0)

    def ref_loss(p, t, alpha):
        d = p.astype(jnp.float32) - t.astype(jnp.float32)
        return jnp.mean(d * d) + alpha * jnp.mean(jnp.maximum(d, 0.0))

    cases = [
        ((2, 4, 16, 16), jnp.float32, 0.5),    # primary small case, aligned
        ((3, 5, 7, 11), jnp.float32, 0.25),    # < one chunk -> tiny-pad path
        ((2, 8, 128), jnp.bfloat16, 1.0),      # bf16 native pass-through
        ((3, 37, 41), jnp.float32, 0.7),       # ragged -> jnp tail path
        ((4, 520, 515), jnp.float32, 0.5),     # multi-block: tail mask (+ v7x split)
    ]
    for shape, dtype, alpha in cases:
        key, kp, kt = jax.random.split(key, 3)
        preds = jax.random.normal(kp, shape, dtype=jnp.float32).astype(dtype)
        targs = jax.random.normal(kt, shape, dtype=jnp.float32).astype(dtype)

        loss = custom_loss(preds, targs, alpha)
        jax.block_until_ready(loss)

        expected = ref_loss(preds, targs, alpha)
        assert jnp.allclose(loss, expected, rtol=1e-4, atol=1e-5), (
            shape, float(loss), float(expected))

    print("KERNEL_OK")
</pallas_src>

<mosaic_0001>
module attributes {stable_mosaic.version = 11 : i64} {
  func.func @_loss_kernel(%arg0: i32, %arg1: i32, %arg2: memref<16x128xf32, #tpu.memory_space<vmem>>, %arg3: memref<16x128xf32, #tpu.memory_space<vmem>>, %arg4: memref<1x16x128xf32, #tpu.memory_space<vmem>>, %arg5: memref<1x16x128xf32, #tpu.memory_space<vmem>>, %arg6: memref<16x128xf32, #tpu.memory_space<vmem>>, %arg7: memref<16x128xf32, #tpu.memory_space<vmem>>) attributes {dimension_semantics = [#tpu.dimension_semantics<parallel>, #tpu.dimension_semantics<arbitrary>], iteration_bounds = array<i64: 1, 1>, scalar_prefetch = 0 : i64, scratch_operands = 2 : i64, tpu.core_type = #tpu.core_type<tc>, window_params = [{transform_indices = @transform_0, window_bounds = array<i64: 16, 128>}, {transform_indices = @transform_1, window_bounds = array<i64: 16, 128>}, {transform_indices = @transform_2, window_bounds = array<i64: 1, 16, 128>}, {transform_indices = @transform_3, window_bounds = array<i64: 1, 16, 128>}]} {
    %c0_i32 = arith.constant 0 : i32
    %0 = arith.cmpi eq, %arg1, %c0_i32 : i32
    %1 = arith.extui %0 : i1 to i32
    %c0_i32_0 = arith.constant 0 : i32
    %2 = arith.cmpi ne, %1, %c0_i32_0 : i32
    scf.if %2 {
      %cst_13 = arith.constant 0.000000e+00 : f32
      %21 = vector.broadcast %cst_13 : f32 to vector<16x128xf32>
      %c0_14 = arith.constant 0 : index
      %c0_15 = arith.constant 0 : index
      %22 = vector.load %arg6[%c0_14, %c0_15] : memref<16x128xf32, #tpu.memory_space<vmem>>, vector<16x128xf32>
      tpu.vector_store %arg6[%c0_14, %c0_15], %21 {strides = array<i32>} : memref<16x128xf32, #tpu.memory_space<vmem>>, vector<16x128xf32>,
      %cst_16 = arith.constant 0.000000e+00 : f32
      %23 = vector.broadcast %cst_16 : f32 to vector<16x128xf32>
      %c0_17 = arith.constant 0 : index
      %c0_18 = arith.constant 0 : index
      %24 = vector.load %arg7[%c0_17, %c0_18] : memref<16x128xf32, #tpu.memory_space<vmem>>, vector<16x128xf32>
      tpu.vector_store %arg7[%c0_17, %c0_18], %23 {strides = array<i32>} : memref<16x128xf32, #tpu.memory_space<vmem>>, vector<16x128xf32>,
    } else {
    }
    %c0_i32_1 = arith.constant 0 : i32
    %3 = tpu.assume_multiple %c0_i32_1, 16 : i32
    %4 = arith.index_cast %3 : i32 to index
    %c0 = arith.constant 0 : index
    %5 = vector.load %arg2[%4, %c0] : memref<16x128xf32, #tpu.memory_space<vmem>>, vector<16x128xf32>
    %6 = arith.index_cast %3 : i32 to index
    %c0_2 = arith.constant 0 : index
    %7 = vector.load %arg3[%6, %c0_2] : memref<16x128xf32, #tpu.memory_space<vmem>>, vector<16x128xf32>
    %8 = arith.subf %5, %7 : vector<16x128xf32>
    %9 = arith.mulf %8, %8 : vector<16x128xf32>
    %cst = arith.constant 0.000000e+00 : f32
    %10 = vector.broadcast %cst : f32 to vector<16x128xf32>
    %11 = arith.maximumf %8, %10 : vector<16x128xf32>
    %c0_3 = arith.constant 0 : index
    %c0_4 = arith.constant 0 : index
    %12 = vector.load %arg6[%c0_3, %c0_4] : memref<16x128xf32, #tpu.memory_space<vmem>>, vector<16x128xf32>
    %13 = arith.addf %12, %9 : vector<16x128xf32>
    %c0_5 = arith.constant 0 : index
    %c0_6 = arith.constant 0 : index
    %14 = vector.load %arg6[%c0_5, %c0_6] : memref<16x128xf32, #tpu.memory_space<vmem>>, vector<16x128xf32>
    tpu.vector_store %arg6[%c0_5, %c0_6], %13 {strides = array<i32>} : memref<16x128xf32, #tpu.memory_space<vmem>>, vector<16x128xf32>,
    %c0_7 = arith.constant 0 : index
    %c0_8 = arith.constant 0 : index
    %15 = vector.load %arg7[%c0_7, %c0_8] : memref<16x128xf32, #tpu.memory_space<vmem>>, vector<16x128xf32>
    %16 = arith.addf %15, %11 : vector<16x128xf32>
    %c0_9 = arith.constant 0 : index
    %c0_10 = arith.constant 0 : index
    %17 = vector.load %arg7[%c0_9, %c0_10] : memref<16x128xf32, #tpu.memory_space<vmem>>, vector<16x128xf32>
    tpu.vector_store %arg7[%c0_9, %c0_10], %16 {strides = array<i32>} : memref<16x128xf32, #tpu.memory_space<vmem>>, vector<16x128xf32>,
    %c0_i32_11 = arith.constant 0 : i32
    %18 = arith.cmpi eq, %arg1, %c0_i32_11 : i32
    %19 = arith.extui %18 : i1 to i32
    %c0_i32_12 = arith.constant 0 : i32
    %20 = arith.cmpi ne, %19, %c0_i32_12 : i32
    scf.if %20 {
      %c0_13 = arith.constant 0 : index
      %c0_14 = arith.constant 0 : index
      %21 = vector.load %arg6[%c0_13, %c0_14] : memref<16x128xf32, #tpu.memory_space<vmem>>, vector<16x128xf32>
      %c0_15 = arith.constant 0 : index
      %c0_16 = arith.constant 0 : index
      %c0_17 = arith.constant 0 : index
      %22 = vector.load %arg4[%c0_15, %c0_16, %c0_17] : memref<1x16x128xf32, #tpu.memory_space<vmem>>, vector<1x16x128xf32>
      %23 = vector.shape_cast %22 : vector<1x16x128xf32> to vector<16x128xf32>
      %24 = vector.shape_cast %21 : vector<16x128xf32> to vector<1x16x128xf32>
      tpu.vector_store %arg4[%c0_15, %c0_16, %c0_17], %24 {strides = array<i32>} : memref<1x16x128xf32, #tpu.memory_space<vmem>>, vector<1x16x128xf32>,
      %c0_18 = arith.constant 0 : index
      %c0_19 = arith.constant 0 : index
      %25 = vector.load %arg7[%c0_18, %c0_19] : memref<16x128xf32, #tpu.memory_space<vmem>>, vector<16x128xf32>
      %c0_20 = arith.constant 0 : index
      %c0_21 = arith.constant 0 : index
      %c0_22 = arith.constant 0 : index
      %26 = vector.load %arg5[%c0_20, %c0_21, %c0_22] : memref<1x16x128xf32, #tpu.memory_space<vmem>>, vector<1x16x128xf32>
      %27 = vector.shape_cast %26 : vector<1x16x128xf32> to vector<16x128xf32>
      %28 = vector.shape_cast %25 : vector<16x128xf32> to vector<1x16x128xf32>
      tpu.vector_store %arg5[%c0_20, %c0_21, %c0_22], %28 {strides = array<i32>} : memref<1x16x128xf32, #tpu.memory_space<vmem>>, vector<1x16x128xf32>,
    } else {
    }
    return
  }
  func.func @transform_0(%arg0: i32, %arg1: i32) -> (i32, i32) {
    %c1_i32 = arith.constant 1 : i32
    %0 = arith.muli %arg0, %c1_i32 : i32
    %1 = arith.addi %0, %arg1 : i32
    %c0_i32 = arith.constant 0 : i32
    %c0_i32_0 = arith.constant 0 : i32
    return %1, %c0_i32 : i32, i32
  }
  func.func @transform_1(%arg0: i32, %arg1: i32) -> (i32, i32) {
    %c1_i32 = arith.constant 1 : i32
    %0 = arith.muli %arg0, %c1_i32 : i32
    %1 = arith.addi %0, %arg1 : i32
    %c0_i32 = arith.constant 0 : i32
    %c0_i32_0 = arith.constant 0 : i32
    return %1, %c0_i32 : i32, i32
  }
  func.func @transform_2(%arg0: i32, %arg1: i32) -> (i32, i32, i32) {
    %c0_i32 = arith.constant 0 : i32
    %c0_i32_0 = arith.constant 0 : i32
    %c0_i32_1 = arith.constant 0 : i32
    return %arg0, %c0_i32, %c0_i32_0 : i32, i32, i32
  }
  func.func @transform_3(%arg0: i32, %arg1: i32) -> (i32, i32, i32) {
    %c0_i32 = arith.constant 0 : i32
    %c0_i32_0 = arith.constant 0 : i32
    %c0_i32_1 = arith.constant 0 : i32
    return %arg0, %c0_i32, %c0_i32_0 : i32, i32, i32
  }
}

</mosaic_0001>

<llo_original>
// kernel: tpu_custom_call.1
$region0: #{tpu_custom_call.1}
  #allocation0 [shape = 'u32[]', space=smem, size = 0x4, offset = 0x4, fixed_abs, tag = 'smem constant byte address 0x4 - core index']
  #allocation1 [shape = 'u32[72,128]{1,0:T(1,128)}', space=vmem, size = 0x9000, scoped, tag = 'internal scratch']
  #allocation2 [shape = 'f32[16,128]{1,0:T(8,128)}', space=vmem, size = 0x2000, scoped, tag = 'scratch operand']
  #allocation3 [shape = 'f32[16,128]{1,0:T(8,128)}', space=vmem, size = 0x2000, scoped, tag = 'scratch operand']
  %s0 = inlined_call_operand.hbm [shape: f32[16,128], index: 0, kind: input, shape index: {}]
  %s1 = inlined_call_operand.hbm [shape: f32[16,128], index: 1, kind: input, shape index: {}]
  %s2 = inlined_call_operand.hbm [shape: f32[1,16,128], index: 2, kind: output, shape index: {0}]
  %s3 = inlined_call_operand.hbm [shape: f32[1,16,128], index: 3, kind: output, shape index: {1}]
  %4 = xla_tuple %s2, %s3
  %s5 = sld [smem:[#allocation0]]
  $region42: #{tpu_custom_call.1} parent=0
    _
  %s7 = ssub.s32 1, %s5
  %s8 = scalar_select 0, %s7, %s5
  $region1: #{tpu_custom_call.1} parent=0
    #allocation4 [shape = 'u8[8192]{0}', space=vmem, size = 0x2000, scoped, tag = 'input window, operand 0, single buffered']
    #allocation5 [shape = 's32[1]{0}', space=sflag, size = 0x4, scoped, tag = 'scoped memory for tpu_custom_call.1']
    #allocation6 [shape = 's32[1]{0}', space=sflag, size = 0x4, scoped, tag = 'scoped memory for tpu_custom_call.1']
    #allocation7 [shape = 'u8[8192]{0}', space=vmem, size = 0x2000, scoped, tag = 'input window, operand 1, single buffered']
    #allocation8 [shape = 's32[1]{0}', space=sflag, size = 0x4, scoped, tag = 'scoped memory for tpu_custom_call.1']
    #allocation9 [shape = 'u8[8192]{0}', space=vmem, size = 0x2000, scoped, tag = 'output window, operand 0, single buffered']
    #allocation10 [shape = 'u8[8192]{0}', space=vmem, size = 0x2000, scoped, tag = 'output window, operand 1, single buffered']
    #allocation11 [shape = 's32[1]{0}', space=sflag, size = 0x4, scoped, tag = 'scoped memory for tpu_custom_call.1']
    %9 = vsyncpa [#allocation5], 0
    %10 = vsyncpa [#allocation8], 0
    %11 = vsyncpa [#allocation6], 0
    %12 = vsyncpa [#allocation11], 0
    // Predicated region
    $region2: #{tpu_custom_call.1} parent=1 // pred_check
      _
    $region3: #{tpu_custom_call.1} parent=1 // pred_check_branch
      %14 = sbr.rel (0) target = $region5
    $region4: #{tpu_custom_call.1} parent=1 // pred_region
      %s15 = sadd.s32 0, 0
      %s16 = smul.u32 2, %s15
      %18 = vsyncadd [#allocation5], 0
      %s19 = smul.addr %s16, 8
      %s20 = scalar_lea.hbm %s0, %s19
      %s21 = sshll.u32 %s20, 4
      %s22 = int_to_ptr.hbm [resolvable:$true] %s21
      %s23 = sshll.u32 [#allocation4], 4
      %s24 = int_to_ptr.vmem [resolvable:$true] %s23
      %29 = dma.hbm_to_vmem [thread:$0]  %s22, 256, %s24, [#allocation5], 128, 128, 8
    $region5: #{tpu_custom_call.1} parent=1 // pred_fallthru
      _
    // Predicated region
    $region6: #{tpu_custom_call.1} parent=1 // pred_check
      _
    $region7: #{tpu_custom_call.1} parent=1 // pred_check_branch
      %31 = sbr.rel (0) target = $region9
    $region8: #{tpu_custom_call.1} parent=1 // pred_region
      %s32 = sadd.s32 0, 0
      %s33 = smul.u32 2, %s32
      %35 = vsyncadd [#allocation8], 0
      %s36 = smul.addr %s33, 8
      %s37 = scalar_lea.hbm %s1, %s36
      %s38 = sshll.u32 %s37, 4
      %s39 = int_to_ptr.hbm [resolvable:$true] %s38
      %s40 = sshll.u32 [#allocation7], 4
      %s41 = int_to_ptr.vmem [resolvable:$true] %s40
      %46 = dma.hbm_to_vmem [thread:$0]  %s39, 256, %s41, [#allocation8], 128, 128, 8
    $region9: #{tpu_custom_call.1} parent=1 // pred_fallthru
      _
    // Predicated region
    $region10: #{tpu_custom_call.1} parent=1 // pred_check
      _
    $region11: #{tpu_custom_call.1} parent=1 // pred_check_branch
      %48 = sbr.rel (0) target = $region13
    $region12: #{tpu_custom_call.1} parent=1 // pred_region
      %50 = dma.done [#allocation5], 256
    $region13: #{tpu_custom_call.1} parent=1 // pred_fallthru
      _
    // Predicated region
    $region14: #{tpu_custom_call.1} parent=1 // pred_check
      _
    $region15: #{tpu_custom_call.1} parent=1 // pred_check_branch
      %52 = sbr.rel (0) target = $region17
    $region16: #{tpu_custom_call.1} parent=1 // pred_region
      %54 = dma.done [#allocation8], 256
    $region17: #{tpu_custom_call.1} parent=1 // pred_fallthru
      _
    %s55 = sadd.s32 0, 0
    %s56 = smul.u32 2, %s55
    %s57 = sadd.s32 0, 0
    %s58 = smul.u32 2, %s57
    %p59 = scmp.eq.s32.totalorder 0, 0
    // Predicated region
    $region18: #{tpu_custom_call.1} parent=1 // pred_check
      %p60 = pneg %p59
    $region19: #{tpu_custom_call.1} parent=1 // pred_check_branch
      %62 = sbr.rel (%p60) target = $region21
    $region20: #{tpu_custom_call.1} parent=1 // pred_region
      %63 = vst [vmem:[#allocation2] sm:$0xff] 0.0
      %64 = vst [vmem:[#allocation2 + $0x8] sm:$0xff] 0.0
      %65 = vst [vmem:[#allocation3] sm:$0xff] 0.0
      %66 = vst [vmem:[#allocation3 + $0x8] sm:$0xff] 0.0
    $region21: #{tpu_custom_call.1} parent=1 // pred_fallthru
      _
    %v67 = vld [vmem:[#allocation4] sm:$0xff]
    %v68 = vld [vmem:[#allocation4 + $0x8] sm:$0xff]
    %v69 = vld [vmem:[#allocation7] sm:$0xff]
    %v70 = vld [vmem:[#allocation7 + $0x8] sm:$0xff]
    %v71 = vsub.f32 %v67, %v69
    %v72 = vsub.f32 %v68, %v70
    %v73 = vmul.f32 %v71, %v71
    %v74 = vmul.f32 %v72, %v72
    %v75 = vmax.f32 %v71, 0.0
    %v76 = vmax.f32 %v72, 0.0
    %v77 = vld [vmem:[#allocation2] sm:$0xff]
    %v78 = vld [vmem:[#allocation2 + $0x8] sm:$0xff]
    %v79 = vadd.f32 %v77, %v73
    %v80 = vadd.f32 %v78, %v74
    %81 = vst [vmem:[#allocation2] sm:$0xff] %v79
    %82 = vst [vmem:[#allocation2 + $0x8] sm:$0xff] %v80
    %v83 = vld [vmem:[#allocation3] sm:$0xff]
    %v84 = vld [vmem:[#allocation3 + $0x8] sm:$0xff]
    %v85 = vadd.f32 %v83, %v75
    %v86 = vadd.f32 %v84, %v76
    %87 = vst [vmem:[#allocation3] sm:$0xff] %v85
    %88 = vst [vmem:[#allocation3 + $0x8] sm:$0xff] %v86
    // Predicated region
    $region22: #{tpu_custom_call.1} parent=1 // pred_check
      %p89 = pneg %p59
    $region23: #{tpu_custom_call.1} parent=1 // pred_check_branch
      %91 = sbr.rel (%p89) target = $region25
    $region24: #{tpu_custom_call.1} parent=1 // pred_region
      %v92 = vld [vmem:[#allocation2] sm:$0xff]
      %v93 = vld [vmem:[#allocation2 + $0x8] sm:$0xff]
      %94 = vst [vmem:[#allocation9] sm:$0xff] %v92
      %95 = vst [vmem:[#allocation9 + $0x8] sm:$0xff] %v93
      %v96 = vld [vmem:[#allocation3] sm:$0xff]
      %v97 = vld [vmem:[#allocation3 + $0x8] sm:$0xff]
      %98 = vst [vmem:[#allocation10] sm:$0xff] %v96
      %99 = vst [vmem:[#allocation10 + $0x8] sm:$0xff] %v97
    $region25: #{tpu_custom_call.1} parent=1 // pred_fallthru
      _
    // Predicated region
    $region26: #{tpu_custom_call.1} parent=1 // pred_check
      _
    $region27: #{tpu_custom_call.1} parent=1 // pred_check_branch
      %101 = sbr.rel (0) target = $region29
    $region28: #{tpu_custom_call.1} parent=1 // pred_region
      %103 = vsyncadd [#allocation6], 0
      %s104 = sshll.u32 [#allocation9], 4
      %s105 = int_to_ptr.vmem [resolvable:$true] %s104
      %s106 = sshll.u32 %s2, 4
      %s107 = int_to_ptr.hbm [resolvable:$true] %s106
      %112 = dma.vmem_to_hbm [thread:$0]  %s105, 256, %s107, [#allocation6], 128, 128, 8
    $region29: #{tpu_custom_call.1} parent=1 // pred_fallthru
      _
    // Predicated region
    $region30: #{tpu_custom_call.1} parent=1 // pred_check
      _
    $region31: #{tpu_custom_call.1} parent=1 // pred_check_branch
      %114 = sbr.rel (0) target = $region33
    $region32: #{tpu_custom_call.1} parent=1 // pred_region
      %116 = vsyncadd [#allocation11], 0
      %s117 = sshll.u32 [#allocation10], 4
      %s118 = int_to_ptr.vmem [resolvable:$true] %s117
      %s119 = sshll.u32 %s3, 4
      %s120 = int_to_ptr.hbm [resolvable:$true] %s119
      %125 = dma.vmem_to_hbm [thread:$0]  %s118, 256, %s120, [#allocation11], 128, 128, 8
    $region33: #{tpu_custom_call.1} parent=1 // pred_fallthru
      _
    // Predicated region
    $region34: #{tpu_custom_call.1} parent=1 // pred_check
      _
    $region35: #{tpu_custom_call.1} parent=1 // pred_check_branch
      %127 = sbr.rel (0) target = $region37
    $region36: #{tpu_custom_call.1} parent=1 // pred_region
      %129 = dma.done [#allocation6], 256
    $region37: #{tpu_custom_call.1} parent=1 // pred_fallthru
      _
    // Predicated region
    $region38: #{tpu_custom_call.1} parent=1 // pred_check
      _
    $region39: #{tpu_custom_call.1} parent=1 // pred_check_branch
      %131 = sbr.rel (0) target = $region41
    $region40: #{tpu_custom_call.1} parent=1 // pred_region
      %133 = dma.done [#allocation11], 256
    $region41: #{tpu_custom_call.1} parent=1 // pred_fallthru
      _
    %134 = vsyncpa [#allocation5], 1
    %135 = vsyncpa [#allocation8], 1
    %136 = vsyncpa [#allocation6], 1
    %137 = vsyncpa [#allocation11], 1

</llo_original>
